<compile_context>
chip_gen: v7x
topology: tpu7x:2x2x1
jax: 0.10.0
libtpu: 0.0.40
codegen_flags: <defaults>
</compile_context>

<pallas_src>
import functools

import jax
import jax.numpy as jnp
from jax.experimental import pallas as pl
from jax.experimental.pallas import tpu as pltpu


def _categorical_kernel(x_ref, w_ref, b_ref, logits_ref, probs_ref):
    # Linear layer (MXU): [TM, D] @ [D, N] + [1, N]
    raw = jnp.dot(x_ref[...], w_ref[...],
                  preferred_element_type=jnp.float32) + b_ref[...]
    # Categorical(logits=...) normalization: logits - logsumexp(logits, -1)
    m = jnp.max(raw, axis=-1, keepdims=True)
    shifted = raw - m
    e = jnp.exp(shifted)
    denom = jnp.sum(e, axis=-1, keepdims=True)
    # Normalized logits: reuse `shifted` (saves a VALU sub/add + a live vreg).
    logits_ref[...] = (shifted - jnp.log(denom)).astype(logits_ref.dtype)
    # probs = e * (1/denom) on the EUP slot instead of a VALU divide sequence.
    inv = pl.reciprocal(denom, approx=True)
    probs_ref[...] = (e * inv).astype(probs_ref.dtype)


@functools.partial(jax.jit, static_argnames=("block_rows",))
def categorical_forward(x, w_t, b, *, block_rows=512):
    """x: [B, D] f32, w_t: [D, N] f32, b: [1, N] f32.

    Returns (normalized_logits [B, N], probs [B, N]) — the tensor state of
    torch.distributions.Categorical(logits=linear(x)).
    """
    B, D = x.shape
    N = w_t.shape[1]

    if B <= block_rows:
        tm = B                      # full-dim block: exempt from (8,128) rule
    else:
        tm = block_rows             # 512: multiple of 8, good f32 tile size
    grid = (pl.cdiv(B, tm),)

    cost = pl.CostEstimate(
        flops=2 * B * D * N,
        transcendentals=2 * B * N,
        bytes_accessed=4 * (B * D + D * N + N + 2 * B * N),
    )

    return pl.pallas_call(
        _categorical_kernel,
        grid=grid,
        in_specs=[
            pl.BlockSpec((tm, D), lambda i: (i, 0)),   # x: tiled over batch
            pl.BlockSpec((D, N), lambda i: (0, 0)),    # w_t: resident
            pl.BlockSpec((1, N), lambda i: (0, 0)),    # bias: resident
        ],
        out_specs=(
            pl.BlockSpec((tm, N), lambda i: (i, 0)),
            pl.BlockSpec((tm, N), lambda i: (i, 0)),
        ),
        out_shape=(
            jax.ShapeDtypeStruct((B, N), jnp.float32),
            jax.ShapeDtypeStruct((B, N), jnp.float32),
        ),
        compiler_params=pltpu.CompilerParams(
            dimension_semantics=("parallel",),         # megacore on v7x
            vmem_limit_bytes=32 * 1024 * 1024,         # <= half of v7x VMEM
        ),
        cost_estimate=cost,
    )(x, w_t, b)


def orthogonal_init(key, rows, cols, gain):
    """Deterministic replica of torch.nn.init.orthogonal_ for a 2-D weight."""
    transpose = rows < cols
    shape = (cols, rows) if transpose else (rows, cols)
    a = jax.random.normal(key, shape, dtype=jnp.float32)
    q, r = jnp.linalg.qr(a)
    # sign correction so the decomposition is unique (matches torch)
    d = jnp.sign(jnp.diagonal(r))
    q = q * d[None, :]
    if transpose:
        q = q.T
    return gain * q  # [rows, cols]


def _reference(x, w_t, b):
    raw = x @ w_t + b
    logits = raw - jax.scipy.special.logsumexp(raw, axis=-1, keepdims=True)
    probs = jax.nn.softmax(raw, axis=-1)
    return logits, probs


if __name__ == "__main__":
    key = jax.random.PRNGKey(0)
    k_x, k_w, k_x2 = jax.random.split(key, 3)

    batch = 2
    num_inputs = 32    # hidden features
    num_outputs = 8    # number of discrete actions

    # Parameters (matching Categorical.__init__ shapes / init scheme):
    # nn.Linear weight: [num_outputs, num_inputs], orthogonal_ gain=0.01, bias=0
    w = orthogonal_init(k_w, num_outputs, num_inputs, gain=0.01)  # [N, D]
    b = jnp.zeros((1, num_outputs), dtype=jnp.float32)
    w_t = w.T                                                      # [D, N]

    # --- small test (single full-batch block) ---
    x = jax.random.normal(k_x, (batch, num_inputs), dtype=jnp.float32)
    logits, probs = categorical_forward(x, w_t, b)
    jax.block_until_ready((logits, probs))

    ref_logits, ref_probs = _reference(x, w_t, b)
    assert jnp.allclose(logits, ref_logits, atol=1e-5)
    # probs use pl.reciprocal(approx=True) -> ~1e-4 relative error budget.
    assert jnp.allclose(probs, ref_probs, atol=2e-3)
    assert jnp.allclose(jnp.sum(probs, axis=-1), 1.0, atol=2e-3)

    # --- gridded test (multiple batch tiles incl. a partial last block) ---
    big_batch = 1029
    x2 = jax.random.normal(k_x2, (big_batch, num_inputs), dtype=jnp.float32)
    logits2, probs2 = categorical_forward(x2, w_t, b)
    jax.block_until_ready((logits2, probs2))

    ref_logits2, ref_probs2 = _reference(x2, w_t, b)
    assert jnp.allclose(logits2, ref_logits2, atol=1e-5)
    assert jnp.allclose(probs2, ref_probs2, atol=2e-3)
    assert jnp.allclose(jnp.sum(probs2, axis=-1), 1.0, atol=2e-3)

    print("KERNEL_OK")
</pallas_src>

<mosaic_0001>
module attributes {stable_mosaic.version = 11 : i64} {
  func.func @_categorical_kernel(%arg0: i32, %arg1: memref<2x32xf32, #tpu.memory_space<vmem>>, %arg2: memref<32x8xf32, #tpu.memory_space<vmem>>, %arg3: memref<1x8xf32, #tpu.memory_space<vmem>>, %arg4: memref<2x8xf32, #tpu.memory_space<vmem>>, %arg5: memref<2x8xf32, #tpu.memory_space<vmem>>) attributes {dimension_semantics = [#tpu.dimension_semantics<parallel>], iteration_bounds = array<i64: 1>, scalar_prefetch = 0 : i64, scratch_operands = 0 : i64, tpu.core_type = #tpu.core_type<tc>, window_params = [{transform_indices = @transform_0, window_bounds = array<i64: 2, 32>}, {pipeline_mode = #tpu.pipeline_mode<synchronous>, transform_indices = @transform_1, window_bounds = array<i64: 32, 8>}, {pipeline_mode = #tpu.pipeline_mode<synchronous>, transform_indices = @transform_2, window_bounds = array<i64: 1, 8>}, {transform_indices = @transform_3, window_bounds = array<i64: 2, 8>}, {transform_indices = @transform_4, window_bounds = array<i64: 2, 8>}]} {
    %c0 = arith.constant 0 : index
    %c0_0 = arith.constant 0 : index
    %0 = vector.load %arg1[%c0, %c0_0] : memref<2x32xf32, #tpu.memory_space<vmem>>, vector<2x32xf32>
    %c0_1 = arith.constant 0 : index
    %c0_2 = arith.constant 0 : index
    %1 = vector.load %arg2[%c0_1, %c0_2] : memref<32x8xf32, #tpu.memory_space<vmem>>, vector<32x8xf32>
    %cst = arith.constant dense<0.000000e+00> : vector<2x8xf32>
    %2 = tpu.matmul %0, %1, %cst {dimension_numbers = #tpu.dot_dimension_numbers<[1], [0], [0], [1], [0, 0, 1, 1], [], []>} : vector<2x32xf32>, vector<32x8xf32>, vector<2x8xf32> -> vector<2x8xf32>
    %c0_3 = arith.constant 0 : index
    %c0_4 = arith.constant 0 : index
    %3 = vector.load %arg3[%c0_3, %c0_4] : memref<1x8xf32, #tpu.memory_space<vmem>>, vector<1x8xf32>
    %4 = vector.broadcast %3 : vector<1x8xf32> to vector<2x8xf32>
    %5 = arith.addf %2, %4 : vector<2x8xf32>
    %cst_5 = arith.constant dense<0xFF800000> : vector<2xf32>
    %6 = vector.multi_reduction <maximumf>, %5, %cst_5 [1] : vector<2x8xf32> to vector<2xf32>
    %7 = vector.shape_cast %6 : vector<2xf32> to vector<2x1xf32>
    %8 = vector.broadcast %7 : vector<2x1xf32> to vector<2x8xf32>
    %9 = arith.subf %5, %8 : vector<2x8xf32>
    %10 = math.exp %9 : vector<2x8xf32>
    %cst_6 = arith.constant dense<0.000000e+00> : vector<2xf32>
    %11 = vector.multi_reduction <add>, %10, %cst_6 [1] : vector<2x8xf32> to vector<2xf32>
    %12 = vector.shape_cast %11 : vector<2xf32> to vector<2x1xf32>
    %13 = math.log %12 : vector<2x1xf32>
    %14 = vector.broadcast %13 : vector<2x1xf32> to vector<2x8xf32>
    %15 = arith.subf %9, %14 : vector<2x8xf32>
    %c0_7 = arith.constant 0 : index
    %c0_8 = arith.constant 0 : index
    %16 = vector.load %arg4[%c0_7, %c0_8] : memref<2x8xf32, #tpu.memory_space<vmem>>, vector<2x8xf32>
    tpu.vector_store %arg4[%c0_7, %c0_8], %15 {strides = array<i32>} : memref<2x8xf32, #tpu.memory_space<vmem>>, vector<2x8xf32>,
    %17 = tpu.reciprocal %12 {approx = true} : vector<2x1xf32> -> vector<2x1xf32>
    %18 = vector.broadcast %17 : vector<2x1xf32> to vector<2x8xf32>
    %19 = arith.mulf %10, %18 : vector<2x8xf32>
    %c0_9 = arith.constant 0 : index
    %c0_10 = arith.constant 0 : index
    %20 = vector.load %arg5[%c0_9, %c0_10] : memref<2x8xf32, #tpu.memory_space<vmem>>, vector<2x8xf32>
    tpu.vector_store %arg5[%c0_9, %c0_10], %19 {strides = array<i32>} : memref<2x8xf32, #tpu.memory_space<vmem>>, vector<2x8xf32>,
    return
  }
  func.func @transform_0(%arg0: i32) -> (i32, i32) {
    %c0_i32 = arith.constant 0 : i32
    %c0_i32_0 = arith.constant 0 : i32
    return %arg0, %c0_i32 : i32, i32
  }
  func.func @transform_1(%arg0: i32) -> (i32, i32) {
    %c0_i32 = arith.constant 0 : i32
    %c0_i32_0 = arith.constant 0 : i32
    %c0_i32_1 = arith.constant 0 : i32
    return %c0_i32, %c0_i32_0 : i32, i32
  }
  func.func @transform_2(%arg0: i32) -> (i32, i32) {
    %c0_i32 = arith.constant 0 : i32
    %c0_i32_0 = arith.constant 0 : i32
    %c0_i32_1 = arith.constant 0 : i32
    return %c0_i32, %c0_i32_0 : i32, i32
  }
  func.func @transform_3(%arg0: i32) -> (i32, i32) {
    %c0_i32 = arith.constant 0 : i32
    %c0_i32_0 = arith.constant 0 : i32
    return %arg0, %c0_i32 : i32, i32
  }
  func.func @transform_4(%arg0: i32) -> (i32, i32) {
    %c0_i32 = arith.constant 0 : i32
    %c0_i32_0 = arith.constant 0 : i32
    return %arg0, %c0_i32 : i32, i32
  }
}

</mosaic_0001>

<llo_original>
// kernel: categorical_forward.1
$region0: #{categorical_forward.1}
  #allocation0 [shape = 'u32[]', space=smem, size = 0x4, offset = 0x4, fixed_abs, tag = 'smem constant byte address 0x4 - core index']
  #allocation1 [shape = 'u32[144,128]{1,0:T(1,128)}', space=vmem, size = 0x12000, scoped, tag = 'internal scratch']
  %s0 = inlined_call_operand.vmem [shape: f32[2,32], index: 0, kind: input, shape index: {}]
  %s1 = inlined_call_operand.vmem [shape: f32[32,8], index: 1, kind: input, shape index: {}]
  %s2 = inlined_call_operand.vmem [shape: f32[1,8], index: 2, kind: input, shape index: {}]
  %s3 = inlined_call_operand.hbm [shape: f32[2,8], index: 3, kind: output, shape index: {0}]
  %s4 = inlined_call_operand.hbm [shape: f32[2,8], index: 4, kind: output, shape index: {1}]
  %5 = xla_tuple %s3, %s4
  %s6 = sld [smem:[#allocation0]]
  $region30: #{categorical_forward.1} parent=0
    _
  %s8 = ssub.s32 1, %s6
  %s9 = scalar_select 0, %s8, %s6
  $region1: #{categorical_forward.1} parent=0
    #allocation2 [shape = 'u8[1024]{0}', space=vmem, size = 0x400, scoped, tag = 'output window, operand 0, single buffered']
    #allocation3 [shape = 's32[1]{0}', space=sflag, size = 0x4, scoped, tag = 'scoped memory for categorical_forward.1']
    #allocation4 [shape = 'u8[1024]{0}', space=vmem, size = 0x400, scoped, tag = 'output window, operand 1, single buffered']
    #allocation5 [shape = 's32[1]{0}', space=sflag, size = 0x4, scoped, tag = 'scoped memory for categorical_forward.1']
    %10 = vsyncpa [#allocation3], 0
    %11 = vsyncpa [#allocation5], 0
    // Predicated region
    $region2: #{categorical_forward.1} parent=1 // pred_check
      _
    $region3: #{categorical_forward.1} parent=1 // pred_check_branch
      %13 = sbr.rel (0) target = $region5
    $region4: #{categorical_forward.1} parent=1 // pred_region
      _
    $region5: #{categorical_forward.1} parent=1 // pred_fallthru
      _
    // Predicated region
    $region6: #{categorical_forward.1} parent=1 // pred_check
      _
    $region7: #{categorical_forward.1} parent=1 // pred_check_branch
      %15 = sbr.rel (0) target = $region9
    $region8: #{categorical_forward.1} parent=1 // pred_region
      _
    $region9: #{categorical_forward.1} parent=1 // pred_fallthru
      _
    // Predicated region
    $region10: #{categorical_forward.1} parent=1 // pred_check
      _
    $region11: #{categorical_forward.1} parent=1 // pred_check_branch
      %17 = sbr.rel (0) target = $region13
    $region12: #{categorical_forward.1} parent=1 // pred_region
      _
    $region13: #{categorical_forward.1} parent=1 // pred_fallthru
      _
    %v18 = vld [vmem:[%s0] sm:$0x3]
    %v19 = vld [vmem:[%s1] sm:$0xff]
    %v20 = vld [vmem:[%s1 + $0x8] sm:$0xff]
    %v21 = vld [vmem:[%s1 + $0x10] sm:$0xff]
    %v22 = vld [vmem:[%s1 + $0x18] sm:$0xff]
    %v23 = vld [vmem:[%s2] sm:$0x1]
    %v25 = vlaneseq
    %v26 = vshrl.u32 %v25, 7
    %v27 = vsub.s32 0, %v26
    %v28 = vrot.slane %v23, %v27
    %vm30 = vcmask 261120
    %v32 = vsel %vm30, %v18, 0
    %34 = vmatprep.subr.mxu0 0.0
    %35 = vmatpush1.msra.mxu0 %v19
    %36 = vmatprep.subr.mxu0 0.0
    %37 = vmatpush1.msra.mxu0 %v20
    %38 = vmatprep.subr.mxu0 0.0
    %39 = vmatpush1.msra.mxu0 %v21
    %40 = vmatprep.subr.mxu0 0.0
    %41 = vmatpush1.msra.mxu0 %v22
    %42 = vmatprep.subr.mxu0 0.0
    %43 = vmatpush1.msra.mxu0 0.0
    %44 = vmatprep.subr.mxu0 0.0
    %45 = vmatpush1.msra.mxu0 0.0
    %46 = vmatprep.subr.mxu0 0.0
    %47 = vmatpush1.msra.mxu0 0.0
    %48 = vmatprep.subr.mxu0 0.0
    %49 = vmatpush1.msra.mxu0 0.0
    %50 = vmatprep.subr.mxu0 0.0
    %51 = vmatpush1.msra.mxu0 0.0
    %52 = vmatprep.subr.mxu0 0.0
    %53 = vmatpush1.msra.mxu0 0.0
    %54 = vmatprep.subr.mxu0 0.0
    %55 = vmatpush1.msra.mxu0 0.0
    %56 = vmatprep.subr.mxu0 0.0
    %57 = vmatpush1.msra.mxu0 0.0
    %58 = vmatprep.subr.mxu0 0.0
    %59 = vmatpush1.msra.mxu0 0.0
    %60 = vmatprep.subr.mxu0 0.0
    %61 = vmatpush1.msra.mxu0 0.0
    %62 = vmatprep.subr.mxu0 0.0
    %63 = vmatpush1.msra.mxu0 0.0
    %64 = vmatprep.subr.mxu0 0.0
    %65 = vmatpush1.msra.mxu0 0.0
    %66 = vmatprep.subr.mxu0 0.0
    %67 = vmatpush1.msra.mxu0 0.0
    %68 = vmatprep.subr.mxu0 0.0
    %69 = vmatpush1.msra.mxu0 0.0
    %70 = vmatprep.subr.mxu0 0.0
    %71 = vmatpush1.msra.mxu0 0.0
    %72 = vmatprep.subr.mxu0 0.0
    %73 = vmatpush1.msra.mxu0 0.0
    %74 = vmatprep.subr.mxu0 0.0
    %75 = vmatpush1.msra.mxu0 0.0
    %76 = vmatprep.subr.mxu0 0.0
    %77 = vmatpush1.msra.mxu0 0.0
    %78 = vmatprep.subr.mxu0 0.0
    %79 = vmatpush1.msra.mxu0 0.0
    %80 = vmatprep.subr.mxu0 0.0
    %81 = vmatpush1.msra.mxu0 0.0
    %82 = vmatprep.subr.mxu0 0.0
    %83 = vmatpush1.msra.mxu0 0.0
    %84 = vmatprep.subr.mxu0 0.0
    %85 = vmatpush1.msra.mxu0 0.0
    %86 = vmatprep.subr.mxu0 0.0
    %87 = vmatpush1.msra.mxu0 0.0
    %88 = vmatprep.subr.mxu0 0.0
    %89 = vmatpush1.msra.mxu0 0.0
    %90 = vmatprep.subr.mxu0 0.0
    %91 = vmatpush1.msra.mxu0 0.0
    %92 = vmatprep.subr.mxu0 0.0
    %93 = vmatpush1.msra.mxu0 0.0
    %94 = vmatprep.subr.mxu0 0.0
    %95 = vmatpush1.msra.mxu0 0.0
    %96 = vmatprep.subr.mxu0 0.0
    %97 = vmatpush1.msra.mxu0 0.0
    %98 = vmatprep.mubr.f32.mxu0 0.0
    %99 = vmatmul.mubr.f32.gmra.mrb[0].mxu0 %v32
    %v100 = vpop.f32.mrb[0].mxu0
    %v101 = vadd.f32 %v28, %v100
    %v102 = vpop.f32.mrb[0].mxu0
    %103 = vdwg.mxu0
    %vm104 = vcmask 58368
    %v105 = vsel %vm104, %v101, -inf
    %106 = vmax.xlane.f32.xlu0 %v105
    %v107 = vpop.xlane.xlu0 %106
    %v108 = vsub.f32 %v101, %v107
    %v109 = vmul.f32 %v108, 1.442695
    %v110 = vpow.pop %v109
    %v111 = vsel %vm104, %v110, 0.0
    %112 = vadd.xlane.f32.xlu0 %v111
    %v113 = vpop.xlane.xlu0 %112
    %v114 = vlog2.pop %v113
    %v115 = vmul.f32 %v114, 0.6931472
    %v116 = vsub.f32 %v108, %v115
    %117 = vst.msk [vmem:[#allocation2] sm:$0x3] %vm104, %v116
    %v118 = vrcp.pop %v113
    %v119 = vmul.f32 %v110, %v118
    %120 = vst.msk [vmem:[#allocation4] sm:$0x3] %vm104, %v119
    // Predicated region
    $region14: #{categorical_forward.1} parent=1 // pred_check
      _
    $region15: #{categorical_forward.1} parent=1 // pred_check_branch
      %122 = sbr.rel (0) target = $region17
    $region16: #{categorical_forward.1} parent=1 // pred_region
      %s124 = ssub.s32 32, 32
      %125 = vsyncadd [#allocation3], %s124
      %s127 = sshll.u32 [#allocation2], 4
      %s128 = int_to_ptr.vmem [resolvable:$true] %s127
      %130 = dma.vmem_to_hbm [thread:$0]  %s128, 32, %s3, [#allocation3]
    $region17: #{categorical_forward.1} parent=1 // pred_fallthru
      _
    // Predicated region
    $region18: #{categorical_forward.1} parent=1 // pred_check
      _
    $region19: #{categorical_forward.1} parent=1 // pred_check_branch
      %132 = sbr.rel (0) target = $region21
    $region20: #{categorical_forward.1} parent=1 // pred_region
      %s134 = ssub.s32 32, 32
      %135 = vsyncadd [#allocation5], %s134
      %s137 = sshll.u32 [#allocation4], 4
      %s138 = int_to_ptr.vmem [resolvable:$true] %s137
      %140 = dma.vmem_to_hbm [thread:$0]  %s138, 32, %s4, [#allocation5]
    $region21: #{categorical_forward.1} parent=1 // pred_fallthru
      _
    // Predicated region
    $region22: #{categorical_forward.1} parent=1 // pred_check
      _
    $region23: #{categorical_forward.1} parent=1 // pred_check_branch
      %142 = sbr.rel (0) target = $region25
    $region24: #{categorical_forward.1} parent=1 // pred_region
      %143 = dma.done [#allocation3], 32
    $region25: #{categorical_forward.1} parent=1 // pred_fallthru
      _
    // Predicated region
    $region26: #{categorical_forward.1} parent=1 // pred_check
      _
    $region27: #{categorical_forward.1} parent=1 // pred_check_branch
      %145 = sbr.rel (0) target = $region29
    $region28: #{categorical_forward.1} parent=1 // pred_region
      %146 = dma.done [#allocation5], 32
    $region29: #{categorical_forward.1} parent=1 // pred_fallthru
      _
    %147 = vsyncpa [#allocation3], 1
    %148 = vsyncpa [#allocation5], 1

</llo_original>
